<compile_context>
chip_gen: v7x
topology: tpu7x:2x2x1
jax: 0.10.0
libtpu: 0.0.40
codegen_flags: <defaults>
</compile_context>

<pallas_src>
import functools
import math

import jax
import jax.numpy as jnp
from jax.experimental import pallas as pl
from jax.experimental.pallas import tpu as pltpu

_HP = jax.lax.Precision.HIGHEST   # for the pure-JAX reference only
_BF16 = jnp.bfloat16
_F32 = jnp.float32


# ----------------------------------------------------------------------------
# pos2posemb3d — tiny sinusoidal preprocessing, done in plain JAX.
# TODO(synk): sin/cos interleave left in plain JAX (strided gather is awkward in Mosaic).
# ----------------------------------------------------------------------------
def pos2posemb3d(pos, num_pos_feats=128, temperature=10000):
    scale = 2.0 * math.pi
    pos = pos * scale
    dim_t = jnp.arange(num_pos_feats, dtype=jnp.float32)
    dim_t = temperature ** (2.0 * (dim_t // 2) / num_pos_feats)

    def interleave(p):  # p: (..., num_pos_feats)
        return jnp.stack(
            (jnp.sin(p[..., 0::2]), jnp.cos(p[..., 1::2])), axis=-1
        ).reshape(p.shape[:-1] + (-1,))

    pos_x = interleave(pos[..., 0, None] / dim_t)
    pos_y = interleave(pos[..., 1, None] / dim_t)
    pos_z = interleave(pos[..., 2, None] / dim_t)
    return jnp.concatenate((pos_x, pos_y, pos_z), axis=-1)


# ----------------------------------------------------------------------------
# Fused position-encoder MLP:  x @ W1 + b1 -> ReLU -> @ W2 + b2   (one kernel)
# Runs once on (num_query, 384) — reference points are identical across the batch.
# ----------------------------------------------------------------------------
def _pos_encoder_kernel(x_ref, w1_ref, b1_ref, w2_ref, b2_ref, o_ref):
    h = jnp.dot(x_ref[...].astype(_BF16), w1_ref[...],
                preferred_element_type=_F32) + b1_ref[...]
    h = jnp.maximum(h, 0.0)
    y = jnp.dot(h.astype(_BF16), w2_ref[...],
                preferred_element_type=_F32) + b2_ref[...]
    o_ref[...] = y.astype(o_ref.dtype)


def position_encoder_pallas(x2d, w1, b1, w2, b2):
    M = x2d.shape[0]
    N = w2.shape[1]
    return pl.pallas_call(
        _pos_encoder_kernel,
        out_shape=jax.ShapeDtypeStruct((M, N), jnp.float32),
    )(x2d, w1.astype(_BF16), b1, w2.astype(_BF16), b2)


# ----------------------------------------------------------------------------
# Fully fused decoder STACK kernel: grid = (batch, layer); carry tgt in VMEM scratch.
# ----------------------------------------------------------------------------
def _decoder_stack_kernel(*refs, n_heads, has_posemb):
    if has_posemb:
        srcs_ref, posemb_ref, qpos_ref = refs[0], refs[1], refs[2]
        w = refs[3:-2]
    else:
        srcs_ref, qpos_ref = refs[0], refs[1]
        posemb_ref = None
        w = refs[2:-2]
    out_ref, tgt_scr = refs[-2], refs[-1]

    (sa_wq, sa_wk, sa_wv, sa_bq, sa_bk, sa_bv, sa_wo, sa_bo,
     n2_g, n2_b,
     ca_wq, ca_wk, ca_wv, ca_bq, ca_bk, ca_bv, ca_wo, ca_bo,
     n1_g, n1_b,
     f_w1, f_b1, f_w2, f_b2, f_g, f_b) = w

    E = out_ref.shape[-1]
    hd = E // n_heads
    scale = 1.0 / math.sqrt(hd)
    eps = 1e-5

    layer = pl.program_id(1)

    # initial tgt = zeros_like(query_pos) (PyTorch: output = torch.zeros_like(query_pos))
    @pl.when(layer == 0)
    def _():
        tgt_scr[...] = jnp.zeros_like(tgt_scr)

    tgt = tgt_scr[...]                               # (Q, E) f32 carry
    qpos = qpos_ref[...].astype(_F32)                # (Q, E)
    src_v = srcs_ref[...].astype(_F32)               # (L, E) values for cross-attn
    if has_posemb:
        src_k = src_v + posemb_ref[...].astype(_F32)  # keys = srcs + posemb_3d (fused add)
    else:
        src_k = src_v

    def layer_norm(x, g_ref, b_ref):
        mu = jnp.mean(x, axis=-1, keepdims=True)
        xc = x - mu
        var = jnp.mean(xc * xc, axis=-1, keepdims=True)
        return xc * jax.lax.rsqrt(var + eps) * g_ref[...] + b_ref[...]

    def split_heads(x):                              # (Lx, E) -> (H, Lx, hd)
        return jnp.concatenate(
            [x[None, :, h * hd:(h + 1) * hd] for h in range(n_heads)], axis=0)

    def mha(q_in, k_in, v_in, wq, wk, wv, bq, bk, bv, wo, bo):
        # dense projections: full E=256 contraction fill on the MXU, bf16 x bf16 -> f32
        q = jnp.dot(q_in.astype(_BF16), wq[...], preferred_element_type=_F32) + bq[...]
        k = jnp.dot(k_in.astype(_BF16), wk[...], preferred_element_type=_F32) + bk[...]
        v = jnp.dot(v_in.astype(_BF16), wv[...], preferred_element_type=_F32) + bv[...]
        qh = split_heads(q * scale).astype(_BF16)    # (H, Lq, hd)
        kh = split_heads(k).astype(_BF16)            # (H, Lk, hd)
        vh = split_heads(v).astype(_BF16)            # (H, Lk, hd)
        # one batched matmul over heads for logits and one for context
        logits = jnp.einsum('hqd,hkd->hqk', qh, kh, preferred_element_type=_F32)
        logits = logits - jnp.max(logits, axis=-1, keepdims=True)
        p = jnp.exp(logits)
        p = p * pl.reciprocal(jnp.sum(p, axis=-1, keepdims=True), approx=True)
        ctx = jnp.einsum('hqk,hkd->hqd', p.astype(_BF16), vh,
                         preferred_element_type=_F32)             # (H, Lq, hd)
        ctx = jnp.concatenate([ctx[h] for h in range(n_heads)], axis=-1)  # (Lq, E)
        return jnp.dot(ctx.astype(_BF16), wo[...], preferred_element_type=_F32) + bo[...]

    # --- self-attention (q = k = tgt + query_pos, v = tgt) + residual + norm2 ---
    qk = tgt + qpos
    sa = mha(qk, qk, tgt, sa_wq, sa_wk, sa_wv, sa_bq, sa_bk, sa_bv, sa_wo, sa_bo)
    t = layer_norm(tgt + sa, n2_g, n2_b)

    # --- cross-attention (q = t + query_pos, k = srcs(+posemb), v = srcs) + residual + norm1 ---
    ca = mha(t + qpos, src_k, src_v, ca_wq, ca_wk, ca_wv, ca_bq, ca_bk, ca_bv, ca_wo, ca_bo)
    t = layer_norm(t + ca, n1_g, n1_b)

    # --- FFN (linear1 -> ReLU -> linear2) + residual + norm ---
    # TODO(synk): dropout layers are identity (eval-mode forward); train-mode dropout not implemented.
    hid = jnp.maximum(
        jnp.dot(t.astype(_BF16), f_w1[...], preferred_element_type=_F32) + f_b1[...], 0.0)
    ff = jnp.dot(hid.astype(_BF16), f_w2[...], preferred_element_type=_F32) + f_b2[...]
    t = layer_norm(t + ff, f_g, f_b)

    # torch.nan_to_num (NaN -> 0, +/-inf -> finite max/min)
    t = jnp.where(jnp.isnan(t), 0.0, t)
    t = jnp.clip(t, jnp.finfo(_F32).min, jnp.finfo(_F32).max)

    tgt_scr[...] = t                       # carry to the next layer
    out_ref[...] = t.astype(out_ref.dtype)  # per-layer output


def decoder_stack_pallas(srcs, query_pos, layer_params, *, n_heads, posemb_3d=None):
    B, L, E = srcs.shape
    Qp = query_pos.shape[0]
    nl = len(layer_params)
    F = layer_params[0]['f_w1'].shape[1]
    hd = E // n_heads
    has_posemb = posemb_3d is not None

    def stack(fn, bf16):
        arr = jnp.stack([fn(lp) for lp in layer_params], axis=0)
        return arr.astype(_BF16) if bf16 else arr

    # weights stacked over layers; matrices in bf16, biases / LN params in f32
    weights = [
        stack(lambda lp: lp['sa_w_in'][:, :E], True),
        stack(lambda lp: lp['sa_w_in'][:, E:2 * E], True),
        stack(lambda lp: lp['sa_w_in'][:, 2 * E:], True),
        stack(lambda lp: lp['sa_b_in'][:, :E], False),
        stack(lambda lp: lp['sa_b_in'][:, E:2 * E], False),
        stack(lambda lp: lp['sa_b_in'][:, 2 * E:], False),
        stack(lambda lp: lp['sa_w_out'], True),
        stack(lambda lp: lp['sa_b_out'], False),
        stack(lambda lp: lp['n2_g'], False),
        stack(lambda lp: lp['n2_b'], False),
        stack(lambda lp: lp['ca_w_in'][:, :E], True),
        stack(lambda lp: lp['ca_w_in'][:, E:2 * E], True),
        stack(lambda lp: lp['ca_w_in'][:, 2 * E:], True),
        stack(lambda lp: lp['ca_b_in'][:, :E], False),
        stack(lambda lp: lp['ca_b_in'][:, E:2 * E], False),
        stack(lambda lp: lp['ca_b_in'][:, 2 * E:], False),
        stack(lambda lp: lp['ca_w_out'], True),
        stack(lambda lp: lp['ca_b_out'], False),
        stack(lambda lp: lp['n1_g'], False),
        stack(lambda lp: lp['n1_b'], False),
        stack(lambda lp: lp['f_w1'], True),
        stack(lambda lp: lp['f_b1'], False),
        stack(lambda lp: lp['f_w2'], True),
        stack(lambda lp: lp['f_b2'], False),
        stack(lambda lp: lp['f_g'], False),
        stack(lambda lp: lp['f_b'], False),
    ]

    # NOTE: weight index_maps vary along the layer grid axis, so default double
    # buffering gives layer-(l+1) weight prefetch while layer l computes
    # (~3 MB resident in bf16 — well under every generation's VMEM limit).
    def wspec(arr):
        nz = arr.ndim - 1
        return pl.BlockSpec((None,) + arr.shape[1:],
                            lambda b, l, nz=nz: (l,) + (0,) * nz)

    data_arrays = [srcs]
    data_specs = [pl.BlockSpec((None, L, E), lambda b, l: (b, 0, 0))]
    if has_posemb:
        data_arrays.append(posemb_3d)
        data_specs.append(pl.BlockSpec((None, L, E), lambda b, l: (b, 0, 0)))
    data_arrays.append(query_pos)
    data_specs.append(pl.BlockSpec((Qp, E), lambda b, l: (0, 0)))
    weight_specs = [wspec(wgt) for wgt in weights]

    kernel = functools.partial(_decoder_stack_kernel,
                               n_heads=n_heads, has_posemb=has_posemb)

    # advisory cost estimate for the XLA scheduler
    proj = lambda rows: 2 * rows * E * E
    core = lambda lq, lk: 2 * 2 * n_heads * lq * lk * hd
    layer_flops = (4 * proj(Qp) + core(Qp, Qp)
                   + 2 * proj(Qp) + 2 * proj(L) + core(Qp, L)
                   + 2 * 2 * Qp * E * F)
    flops = B * nl * layer_flops
    transcendentals = B * nl * (n_heads * Qp * (Qp + L) + 8 * Qp)
    weight_bytes = sum(int(wgt.size) * wgt.dtype.itemsize for wgt in weights)
    data_bytes = sum(int(a.size) * a.dtype.itemsize for a in data_arrays)
    out_bytes = nl * B * Qp * E * 4
    bytes_accessed = int(B * weight_bytes + data_bytes + out_bytes)

    return pl.pallas_call(
        kernel,
        out_shape=jax.ShapeDtypeStruct((nl, B, Qp, E), jnp.float32),
        grid=(B, nl),
        in_specs=data_specs + weight_specs,
        out_specs=pl.BlockSpec((None, None, Qp, E), lambda b, l: (l, b, 0, 0)),
        scratch_shapes=[pltpu.VMEM((Qp, E), jnp.float32)],
        compiler_params=pltpu.CompilerParams(
            dimension_semantics=("parallel", "arbitrary")),
        cost_estimate=pl.CostEstimate(
            flops=int(flops), transcendentals=int(transcendentals),
            bytes_accessed=bytes_accessed),
    )(*data_arrays, *weights)


# ----------------------------------------------------------------------------
# Parameter init (deterministic; all decoder layers are clones of one layer,
# mirroring _get_clones which deep-copies the same initialized module).
# ----------------------------------------------------------------------------
def init_transformer_params(key, d_model, n_heads, num_layers, d_ffn, num_query):
    E, F = d_model, d_ffn
    keys = iter(jax.random.split(key, 64))

    def uni(shape, bound):
        return jax.random.uniform(next(keys), shape, jnp.float32, -bound, bound)

    params = {}
    params['position'] = jax.random.uniform(next(keys), (num_query, 3), jnp.float32, 0.0, 1.0)

    b384 = 1.0 / math.sqrt(384.0)
    bE = 1.0 / math.sqrt(E)
    bF = 1.0 / math.sqrt(F)
    params['pe_w1'] = uni((384, E), b384)
    params['pe_b1'] = uni((1, E), b384)
    params['pe_w2'] = uni((E, E), bE)
    params['pe_b2'] = uni((1, E), bE)

    def attn_block():
        return (uni((E, 3 * E), bE), uni((1, 3 * E), bE), uni((E, E), bE), uni((1, E), bE))

    sa_w_in, sa_b_in, sa_w_out, sa_b_out = attn_block()
    ca_w_in, ca_b_in, ca_w_out, ca_b_out = attn_block()
    layer = {
        'sa_w_in': sa_w_in, 'sa_b_in': sa_b_in, 'sa_w_out': sa_w_out, 'sa_b_out': sa_b_out,
        'n2_g': jnp.ones((1, E), jnp.float32), 'n2_b': jnp.zeros((1, E), jnp.float32),
        'ca_w_in': ca_w_in, 'ca_b_in': ca_b_in, 'ca_w_out': ca_w_out, 'ca_b_out': ca_b_out,
        'n1_g': jnp.ones((1, E), jnp.float32), 'n1_b': jnp.zeros((1, E), jnp.float32),
        'f_w1': uni((E, F), bE), 'f_b1': uni((1, F), bE),
        'f_w2': uni((F, E), bF), 'f_b2': uni((1, E), bF),
        'f_g': jnp.ones((1, E), jnp.float32), 'f_b': jnp.zeros((1, E), jnp.float32),
    }
    params['layers'] = [layer] * num_layers   # clones share initial weights
    return params


# ----------------------------------------------------------------------------
# Full forward (Pallas path).
# ----------------------------------------------------------------------------
def transformer_forward(params, srcs, posemb_3d=None, *, n_heads=8):
    B, L, E = srcs.shape
    Qp = params['position'].shape[0]
    nl = len(params['layers'])

    # reference points are identical per batch -> compute query_pos once, share it
    ref_pts = jnp.broadcast_to(params['position'][None], (B, Qp, 3))
    pe_in = pos2posemb3d(params['position'])                       # (Qp, 384)
    query_pos = position_encoder_pallas(
        pe_in, params['pe_w1'], params['pe_b1'], params['pe_w2'], params['pe_b2'])  # (Qp, E)

    feats_all = decoder_stack_pallas(srcs, query_pos, params['layers'],
                                     n_heads=n_heads, posemb_3d=posemb_3d)  # (nl, B, Qp, E)
    outputs_feats = [feats_all[i] for i in range(nl)]
    outputs_refs = [ref_pts for _ in range(nl)]
    return outputs_feats, outputs_refs


# ----------------------------------------------------------------------------
# Pure-JAX reference (mirrors the PyTorch math in f32) for correctness checking.
# ----------------------------------------------------------------------------
def _layer_norm_ref(x, g, b, eps=1e-5):
    mu = jnp.mean(x, axis=-1, keepdims=True)
    xc = x - mu
    var = jnp.mean(xc * xc, axis=-1, keepdims=True)
    return xc * jax.lax.rsqrt(var + eps) * g + b


def _mha_ref(q_in, k_in, v_in, w_in, b_in, w_out, b_out, n_heads):
    B, Lq, E = q_in.shape
    Lk = k_in.shape[1]
    hd = E // n_heads
    q = jnp.einsum('bld,de->ble', q_in, w_in[:, :E], precision=_HP) + b_in[0, :E]
    k = jnp.einsum('bld,de->ble', k_in, w_in[:, E:2 * E], precision=_HP) + b_in[0, E:2 * E]
    v = jnp.einsum('bld,de->ble', v_in, w_in[:, 2 * E:], precision=_HP) + b_in[0, 2 * E:]
    q = q.reshape(B, Lq, n_heads, hd).transpose(0, 2, 1, 3) * (1.0 / math.sqrt(hd))
    k = k.reshape(B, Lk, n_heads, hd).transpose(0, 2, 1, 3)
    v = v.reshape(B, Lk, n_heads, hd).transpose(0, 2, 1, 3)
    logits = jnp.einsum('bhqd,bhkd->bhqk', q, k, precision=_HP)
    p = jax.nn.softmax(logits, axis=-1)
    ctx = jnp.einsum('bhqk,bhkd->bhqd', p, v, precision=_HP)
    ctx = ctx.transpose(0, 2, 1, 3).reshape(B, Lq, E)
    return jnp.einsum('ble,ef->blf', ctx, w_out, precision=_HP) + b_out[0]


def _decoder_layer_ref(tgt, src, src_k, qpos, lp, n_heads):
    qk = tgt + qpos
    sa = _mha_ref(qk, qk, tgt, lp['sa_w_in'], lp['sa_b_in'], lp['sa_w_out'], lp['sa_b_out'], n_heads)
    t = _layer_norm_ref(tgt + sa, lp['n2_g'], lp['n2_b'])
    ca = _mha_ref(t + qpos, src_k, src, lp['ca_w_in'], lp['ca_b_in'], lp['ca_w_out'], lp['ca_b_out'], n_heads)
    t = _layer_norm_ref(t + ca, lp['n1_g'], lp['n1_b'])
    hid = jax.nn.relu(jnp.einsum('ble,ef->blf', t, lp['f_w1'], precision=_HP) + lp['f_b1'][0])
    ff = jnp.einsum('blf,fe->ble', hid, lp['f_w2'], precision=_HP) + lp['f_b2'][0]
    t = _layer_norm_ref(t + ff, lp['f_g'], lp['f_b'])
    return jnp.nan_to_num(t)


def transformer_forward_ref(params, srcs, posemb_3d=None, *, n_heads=8):
    B, L, E = srcs.shape
    Qp = params['position'].shape[0]
    ref_pts = jnp.broadcast_to(params['position'][None], (B, Qp, 3))
    pe_in = pos2posemb3d(ref_pts)
    h = jnp.einsum('bqd,de->bqe', pe_in, params['pe_w1'], precision=_HP) + params['pe_b1'][0]
    h = jnp.maximum(h, 0.0)
    query_pos = jnp.einsum('bqd,de->bqe', h, params['pe_w2'], precision=_HP) + params['pe_b2'][0]
    src_k = srcs if posemb_3d is None else srcs + posemb_3d
    output = jnp.zeros_like(query_pos)
    feats, refs = [], []
    for lp in params['layers']:
        output = _decoder_layer_ref(output, srcs, src_k, query_pos, lp, n_heads)
        feats.append(output)
        refs.append(ref_pts)
    return feats, refs


if __name__ == "__main__":
    key = jax.random.PRNGKey(0)

    # Small shapes consistent with the module (d_model is fixed at 256 by the spec).
    B, L = 2, 8
    d_model = 256
    n_heads = 8
    num_decoder_layers = 2
    dim_feedforward = 512
    num_query_position = 16

    key, ks, kp = jax.random.split(key, 3)
    srcs = jax.random.normal(ks, (B, L, d_model), jnp.float32)
    posemb_3d = 0.1 * jax.random.normal(kp, (B, L, d_model), jnp.float32)

    params = init_transformer_params(key, d_model, n_heads, num_decoder_layers,
                                     dim_feedforward, num_query_position)

    # NOTE: kernel weights are bf16 while the reference runs f32/HIGHEST, so the
    # comparison tolerance is looser than the previous all-f32 version (per review).
    for pe in (None, posemb_3d):
        feats, ref_points = transformer_forward(params, srcs, pe, n_heads=n_heads)
        feats = jax.block_until_ready(feats)

        feats_ref, ref_points_ref = transformer_forward_ref(params, srcs, pe, n_heads=n_heads)

        assert len(feats) == num_decoder_layers and len(ref_points) == num_decoder_layers
        for f, fr in zip(feats, feats_ref):
            assert f.shape == (B, num_query_position, d_model)
            assert jnp.allclose(f, fr, atol=1e-1, rtol=1e-1), \
                "decoder layer output mismatch vs JAX reference"
        for r, rr in zip(ref_points, ref_points_ref):
            assert r.shape == (B, num_query_position, 3)
            assert jnp.allclose(r, rr), "reference points mismatch"

    print("KERNEL_OK")
</pallas_src>

<mosaic_0001>
module attributes {stable_mosaic.version = 11 : i64} {
  func.func @_pos_encoder_kernel(%arg0: memref<16x384xf32, #tpu.memory_space<vmem>>, %arg1: memref<384x256xbf16, #tpu.memory_space<vmem>>, %arg2: memref<1x256xf32, #tpu.memory_space<vmem>>, %arg3: memref<256x256xbf16, #tpu.memory_space<vmem>>, %arg4: memref<1x256xf32, #tpu.memory_space<vmem>>, %arg5: memref<16x256xf32, #tpu.memory_space<vmem>>) attributes {dimension_semantics = [], scalar_prefetch = 0 : i64, scratch_operands = 0 : i64, tpu.core_type = #tpu.core_type<tc>} {
    %c0 = arith.constant 0 : index
    %c0_0 = arith.constant 0 : index
    %0 = vector.load %arg0[%c0, %c0_0] : memref<16x384xf32, #tpu.memory_space<vmem>>, vector<16x384xf32>
    %1 = arith.truncf %0 : vector<16x384xf32> to vector<16x384xbf16>
    %c0_1 = arith.constant 0 : index
    %c0_2 = arith.constant 0 : index
    %2 = vector.load %arg1[%c0_1, %c0_2] : memref<384x256xbf16, #tpu.memory_space<vmem>>, vector<384x256xbf16>
    %cst = arith.constant dense<0.000000e+00> : vector<16x256xf32>
    %3 = tpu.matmul %1, %2, %cst {dimension_numbers = #tpu.dot_dimension_numbers<[1], [0], [0], [1], [0, 0, 1, 1], [], []>} : vector<16x384xbf16>, vector<384x256xbf16>, vector<16x256xf32> -> vector<16x256xf32>
    %c0_3 = arith.constant 0 : index
    %c0_4 = arith.constant 0 : index
    %4 = vector.load %arg2[%c0_3, %c0_4] : memref<1x256xf32, #tpu.memory_space<vmem>>, vector<1x256xf32>
    %5 = vector.broadcast %4 : vector<1x256xf32> to vector<16x256xf32>
    %6 = arith.addf %3, %5 : vector<16x256xf32>
    %cst_5 = arith.constant 0.000000e+00 : f32
    %7 = vector.broadcast %cst_5 : f32 to vector<16x256xf32>
    %8 = arith.maximumf %6, %7 : vector<16x256xf32>
    %9 = arith.truncf %8 : vector<16x256xf32> to vector<16x256xbf16>
    %c0_6 = arith.constant 0 : index
    %c0_7 = arith.constant 0 : index
    %10 = vector.load %arg3[%c0_6, %c0_7] : memref<256x256xbf16, #tpu.memory_space<vmem>>, vector<256x256xbf16>
    %cst_8 = arith.constant dense<0.000000e+00> : vector<16x256xf32>
    %11 = tpu.matmul %9, %10, %cst_8 {dimension_numbers = #tpu.dot_dimension_numbers<[1], [0], [0], [1], [0, 0, 1, 1], [], []>} : vector<16x256xbf16>, vector<256x256xbf16>, vector<16x256xf32> -> vector<16x256xf32>
    %c0_9 = arith.constant 0 : index
    %c0_10 = arith.constant 0 : index
    %12 = vector.load %arg4[%c0_9, %c0_10] : memref<1x256xf32, #tpu.memory_space<vmem>>, vector<1x256xf32>
    %13 = vector.broadcast %12 : vector<1x256xf32> to vector<16x256xf32>
    %14 = arith.addf %11, %13 : vector<16x256xf32>
    %c0_11 = arith.constant 0 : index
    %c0_12 = arith.constant 0 : index
    %15 = vector.load %arg5[%c0_11, %c0_12] : memref<16x256xf32, #tpu.memory_space<vmem>>, vector<16x256xf32>
    tpu.vector_store %arg5[%c0_11, %c0_12], %14 {strides = array<i32>} : memref<16x256xf32, #tpu.memory_space<vmem>>, vector<16x256xf32>,
    return
  }
}

</mosaic_0001>

<llo_original>
// kernel: tpu_custom_call.1
$region0: #{tpu_custom_call.1}
  #allocation0 [shape = 'u32[]', space=smem, size = 0x4, offset = 0x4, fixed_abs, tag = 'smem constant byte address 0x4 - core index']
  #allocation1 [shape = 'u32[144,128]{1,0:T(1,128)}', space=vmem, size = 0x12000, scoped, tag = 'internal scratch']
  %s0 = inlined_call_operand.hbm [shape: f32[16,384], index: 0, kind: input, shape index: {}]
  %s1 = inlined_call_operand.hbm [shape: bf16[384,256], index: 1, kind: input, shape index: {}]
  %s2 = inlined_call_operand.vmem [shape: f32[1,256], index: 2, kind: input, shape index: {}]
  %s3 = inlined_call_operand.hbm [shape: bf16[256,256], index: 3, kind: input, shape index: {}]
  %s4 = inlined_call_operand.vmem [shape: f32[1,256], index: 4, kind: input, shape index: {}]
  %s5 = inlined_call_operand.hbm [shape: f32[16,256], index: 5, kind: output, shape index: {}]
  %s6 = sld [smem:[#allocation0]]
  $region42: #{tpu_custom_call.1} parent=0
    _
  %s8 = ssub.s32 1, %s6
  %s9 = scalar_select 0, %s8, %s6
  $region1: #{tpu_custom_call.1} parent=0
    #allocation2 [shape = 'u8[24576]{0}', space=vmem, size = 0x6000, scoped, tag = 'input window, operand 0, single buffered']
    #allocation3 [shape = 's32[1]{0}', space=sflag, size = 0x4, scoped, tag = 'scoped memory for tpu_custom_call.1']
    #allocation4 [shape = 's32[1]{0}', space=sflag, size = 0x4, scoped, tag = 'scoped memory for tpu_custom_call.1']
    #allocation5 [shape = 'u8[196608]{0}', space=vmem, size = 0x30000, scoped, tag = 'input window, operand 1, single buffered']
    #allocation6 [shape = 's32[1]{0}', space=sflag, size = 0x4, scoped, tag = 'scoped memory for tpu_custom_call.1']
    #allocation7 [shape = 'u8[131072]{0}', space=vmem, size = 0x20000, scoped, tag = 'input window, operand 3, single buffered']
    #allocation8 [shape = 'u8[16384]{0}', space=vmem, size = 0x4000, scoped, tag = 'output window, operand 0, single buffered']
    %10 = vsyncpa [#allocation3], 0
    %11 = vsyncpa [#allocation6], 0
    %12 = vsyncpa [#allocation4], 0
    // Predicated region
    $region2: #{tpu_custom_call.1} parent=1 // pred_check
      _
    $region3: #{tpu_custom_call.1} parent=1 // pred_check_branch
      %14 = sbr.rel (0) target = $region5
    $region4: #{tpu_custom_call.1} parent=1 // pred_region
      %s16 = ssub.s32 768, 768
      %17 = vsyncadd [#allocation3], %s16
      %s18 = sshll.u32 [#allocation2], 4
      %s19 = int_to_ptr.vmem [resolvable:$true] %s18
      %24 = dma.hbm_to_vmem [thread:$0]  %s0, 768, %s19, [#allocation3], 384, 384, 24
    $region5: #{tpu_custom_call.1} parent=1 // pred_fallthru
      _
    // Predicated region
    $region6: #{tpu_custom_call.1} parent=1 // pred_check
      _
    $region7: #{tpu_custom_call.1} parent=1 // pred_check_branch
      %26 = sbr.rel (0) target = $region9
    $region8: #{tpu_custom_call.1} parent=1 // pred_region
      %s28 = ssub.s32 6144, 6144
      %29 = vsyncadd [#allocation6], %s28
      %s30 = sshll.u32 [#allocation5], 4
      %s31 = int_to_ptr.vmem [resolvable:$true] %s30
      %36 = dma.hbm_to_vmem [thread:$0]  %s1, 6144, %s31, [#allocation6], 128, 128, 8
    $region9: #{tpu_custom_call.1} parent=1 // pred_fallthru
      _
    // Predicated region
    $region10: #{tpu_custom_call.1} parent=1 // pred_check
      _
    $region11: #{tpu_custom_call.1} parent=1 // pred_check_branch
      %38 = sbr.rel (0) target = $region13
    $region12: #{tpu_custom_call.1} parent=1 // pred_region
      _
    $region13: #{tpu_custom_call.1} parent=1 // pred_fallthru
      _
    // Predicated region
    $region14: #{tpu_custom_call.1} parent=1 // pred_check
      _
    $region15: #{tpu_custom_call.1} parent=1 // pred_check_branch
      %40 = sbr.rel (0) target = $region17
    $region16: #{tpu_custom_call.1} parent=1 // pred_region
      %s42 = ssub.s32 4096, 4096
      %43 = vsyncadd [#allocation6], %s42
      %s44 = sshll.u32 [#allocation7], 4
      %s45 = int_to_ptr.vmem [resolvable:$true] %s44
      %50 = dma.hbm_to_vmem [thread:$0]  %s3, 4096, %s45, [#allocation6], 128, 128, 8
    $region17: #{tpu_custom_call.1} parent=1 // pred_fallthru
      _
    // Predicated region
    $region18: #{tpu_custom_call.1} parent=1 // pred_check
      _
    $region19: #{tpu_custom_call.1} parent=1 // pred_check_branch
      %52 = sbr.rel (0) target = $region21
    $region20: #{tpu_custom_call.1} parent=1 // pred_region
      _
    $region21: #{tpu_custom_call.1} parent=1 // pred_fallthru
      _
    // Predicated region
    $region22: #{tpu_custom_call.1} parent=1 // pred_check
      _
    $region23: #{tpu_custom_call.1} parent=1 // pred_check_branch
      %54 = sbr.rel (0) target = $region25
    $region24: #{tpu_custom_call.1} parent=1 // pred_region
      %55 = dma.done [#allocation3], 768
    $region25: #{tpu_custom_call.1} parent=1 // pred_fallthru
      _
    // Predicated region
    $region26: #{tpu_custom_call.1} parent=1 // pred_check
      _
    $region27: #{tpu_custom_call.1} parent=1 // pred_check_branch
      %57 = sbr.rel (0) target = $region29
    $region28: #{tpu_custom_call.1} parent=1 // pred_region
      %58 = dma.done [#allocation6], 6144
    $region29: #{tpu_custom_call.1} parent=1 // pred_fallthru
      _
    // Predicated region
    $region30: #{tpu_custom_call.1} parent=1 // pred_check
      _
    $region31: #{tpu_custom_call.1} parent=1 // pred_check_branch
      %60 = sbr.rel (0) target = $region33
    $region32: #{tpu_custom_call.1} parent=1 // pred_region
      %61 = dma.done [#allocation6], 4096
    $region33: #{tpu_custom_call.1} parent=1 // pred_fallthru
      _
    %v63 = vld [vmem:[#allocation2] sm:$0xff]
    %v64 = vld [vmem:[#allocation2 + $0x8] sm:$0xff]
    %v65 = vld [vmem:[#allocation2 + $0x10] sm:$0xff]
    %v66 = vld [vmem:[#allocation2 + $0x18] sm:$0xff]
    %v67 = vld [vmem:[#allocation2 + $0x20] sm:$0xff]
    %v68 = vld [vmem:[#allocation2 + $0x28] sm:$0xff]
    %v69 = vpack.c.bf16 %v66, %v63
    %v70 = vpack.c.bf16 %v67, %v64
    %v71 = vpack.c.bf16 %v68, %v65
    %v72 = vld [vmem:[#allocation5] sm:$0xff]
    %v73 = vld [vmem:[#allocation5 + $0x8] sm:$0xff]
    %v74 = vld [vmem:[#allocation5 + $0x10] sm:$0xff]
    %v75 = vld [vmem:[#allocation5 + $0x18] sm:$0xff]
    %v76 = vld [vmem:[#allocation5 + $0x20] sm:$0xff]
    %v77 = vld [vmem:[#allocation5 + $0x28] sm:$0xff]
    %v78 = vld [vmem:[#allocation5 + $0x30] sm:$0xff]
    %v79 = vld [vmem:[#allocation5 + $0x38] sm:$0xff]
    %v80 = vld [vmem:[#allocation5 + $0x40] sm:$0xff]
    %v81 = vld [vmem:[#allocation5 + $0x48] sm:$0xff]
    %v82 = vld [vmem:[#allocation5 + $0x50] sm:$0xff]
    %v83 = vld [vmem:[#allocation5 + $0x58] sm:$0xff]
    %v84 = vld [vmem:[#allocation5 + $0x60] sm:$0xff]
    %v85 = vld [vmem:[#allocation5 + $0x68] sm:$0xff]
    %v86 = vld [vmem:[#allocation5 + $0x70] sm:$0xff]
    %v87 = vld [vmem:[#allocation5 + $0x78] sm:$0xff]
    %v88 = vld [vmem:[#allocation5 + $0x80] sm:$0xff]
    %v89 = vld [vmem:[#allocation5 + $0x88] sm:$0xff]
    %v90 = vld [vmem:[#allocation5 + $0x90] sm:$0xff]
    %v91 = vld [vmem:[#allocation5 + $0x98] sm:$0xff]
    %v92 = vld [vmem:[#allocation5 + $0xa0] sm:$0xff]
    %v93 = vld [vmem:[#allocation5 + $0xa8] sm:$0xff]
    %v94 = vld [vmem:[#allocation5 + $0xb0] sm:$0xff]
    %v95 = vld [vmem:[#allocation5 + $0xb8] sm:$0xff]
    %v96 = vld [vmem:[#allocation5 + $0xc0] sm:$0xff]
    %v97 = vld [vmem:[#allocation5 + $0xc8] sm:$0xff]
    %v98 = vld [vmem:[#allocation5 + $0xd0] sm:$0xff]
    %v99 = vld [vmem:[#allocation5 + $0xd8] sm:$0xff]
    %v100 = vld [vmem:[#allocation5 + $0xe0] sm:$0xff]
    %v101 = vld [vmem:[#allocation5 + $0xe8] sm:$0xff]
    %v102 = vld [vmem:[#allocation5 + $0xf0] sm:$0xff]
    %v103 = vld [vmem:[#allocation5 + $0xf8] sm:$0xff]
    %v104 = vld [vmem:[#allocation5 + $0x100] sm:$0xff]
    %v105 = vld [vmem:[#allocation5 + $0x108] sm:$0xff]
    %v106 = vld [vmem:[#allocation5 + $0x110] sm:$0xff]
    %v107 = vld [vmem:[#allocation5 + $0x118] sm:$0xff]
    %v108 = vld [vmem:[#allocation5 + $0x120] sm:$0xff]
    %v109 = vld [vmem:[#allocation5 + $0x128] sm:$0xff]
    %v110 = vld [vmem:[#allocation5 + $0x130] sm:$0xff]
    %v111 = vld [vmem:[#allocation5 + $0x138] sm:$0xff]
    %v112 = vld [vmem:[#allocation5 + $0x140] sm:$0xff]
    %v113 = vld [vmem:[#allocation5 + $0x148] sm:$0xff]
    %v114 = vld [vmem:[#allocation5 + $0x150] sm:$0xff]
    %v115 = vld [vmem:[#allocation5 + $0x158] sm:$0xff]
    %v116 = vld [vmem:[#allocation5 + $0x160] sm:$0xff]
    %v117 = vld [vmem:[#allocation5 + $0x168] sm:$0xff]
    %v118 = vld [vmem:[#allocation5 + $0x170] sm:$0xff]
    %v119 = vld [vmem:[#allocation5 + $0x178] sm:$0xff]
    %v120 = vld [vmem:[%s2] sm:$0x3]
    %v122 = vlaneseq
    %v123 = vshrl.u32 %v122, 7
    %v124 = vsub.s32 0, %v123
    %v125 = vrot.slane %v120, %v124
    %v126 = vlaneseq
    %v127 = vshrl.u32 %v126, 7
    %v128 = vsub.s32 1, %v127
    %v129 = vrot.slane %v120, %v128
    %v180 = vunpack.c.l.b16 %v72
    %v181 = vunpack.c.h.b16 %v72
    %v182 = vunpack.c.l.b16 %v73
    %v183 = vunpack.c.h.b16 %v73
    %v184 = vunpack.c.l.b16 %v74
    %v185 = vunpack.c.h.b16 %v74
    %v186 = vunpack.c.l.b16 %v75
    %v187 = vunpack.c.h.b16 %v75
    %v188 = vunpack.c.l.b16 %v76
    %v189 = vunpack.c.h.b16 %v76
    %v190 = vunpack.c.l.b16 %v77
    %v191 = vunpack.c.h.b16 %v77
    %v192 = vunpack.c.l.b16 %v78
    %v193 = vunpack.c.h.b16 %v78
    %v194 = vunpack.c.l.b16 %v79
    %v195 = vunpack.c.h.b16 %v79
    %v196 = vunpack.c.l.b16 %v80
    %v197 = vunpack.c.h.b16 %v80
    %v198 = vunpack.c.l.b16 %v81
    %v199 = vunpack.c.h.b16 %v81
    %v200 = vunpack.c.l.b16 %v82
    %v201 = vunpack.c.h.b16 %v82
    %v202 = vunpack.c.l.b16 %v83
    %v203 = vunpack.c.h.b16 %v83
    %v204 = vunpack.c.l.b16 %v84
    %v205 = vunpack.c.h.b16 %v84
    %v206 = vunpack.c.l.b16 %v85
    %v207 = vunpack.c.h.b16 %v85
    %v208 = vunpack.c.l.b16 %v86
    %v209 = vunpack.c.h.b16 %v86
    %v210 = vunpack.c.l.b16 %v87
    %v211 = vunpack.c.h.b16 %v87
    %v212 = vunpack.c.l.b16 %v88
    %v213 = vunpack.c.h.b16 %v88
    %v214 = vunpack.c.l.b16 %v89
    %v215 = vunpack.c.h.b16 %v89
    %v216 = vunpack.c.l.b16 %v90
    %v217 = vunpack.c.h.b16 %v90
    %v218 = vunpack.c.l.b16 %v91
    %v219 = vunpack.c.h.b16 %v91
    %v220 = vunpack.c.l.b16 %v92
    %v221 = vunpack.c.h.b16 %v92
    %v222 = vunpack.c.l.b16 %v93
    %v223 = vunpack.c.h.b16 %v93
    %v224 = vunpack.c.l.b16 %v94
    %v225 = vunpack.c.h.b16 %v94
    %v226 = vunpack.c.l.b16 %v95
    %v227 = vunpack.c.h.b16 %v95
    %v228 = vunpack.c.l.b16 %v96
    %v229 = vunpack.c.h.b16 %v96
    %v230 = vunpack.c.l.b16 %v97
    %v231 = vunpack.c.h.b16 %v97
    %v232 = vunpack.c.l.b16 %v98
    %v233 = vunpack.c.h.b16 %v98
    %v234 = vunpack.c.l.b16 %v99
    %v235 = vunpack.c.h.b16 %v99
    %v236 = vunpack.c.l.b16 %v100
    %v237 = vunpack.c.h.b16 %v100
    %v238 = vunpack.c.l.b16 %v101
    %v239 = vunpack.c.h.b16 %v101
    %v240 = vunpack.c.l.b16 %v102
    %v241 = vunpack.c.h.b16 %v102
    %v242 = vunpack.c.l.b16 %v103
    %v243 = vunpack.c.h.b16 %v103
    %v244 = vunpack.c.l.b16 %v104
    %v245 = vunpack.c.h.b16 %v104
    %v246 = vunpack.c.l.b16 %v105
    %v247 = vunpack.c.h.b16 %v105
    %v248 = vunpack.c.l.b16 %v106
    %v249 = vunpack.c.h.b16 %v106
    %v250 = vunpack.c.l.b16 %v107
    %v251 = vunpack.c.h.b16 %v107
    %v252 = vunpack.c.l.b16 %v108
    %v253 = vunpack.c.h.b16 %v108
    %v254 = vunpack.c.l.b16 %v109
    %v255 = vunpack.c.h.b16 %v109
    %v256 = vunpack.c.l.b16 %v110
    %v257 = vunpack.c.h.b16 %v110
    %v258 = vunpack.c.l.b16 %v111
    %v259 = vunpack.c.h.b16 %v111
    %v260 = vunpack.c.l.b16 %v112
    %v261 = vunpack.c.h.b16 %v112
    %v262 = vunpack.c.l.b16 %v113
    %v263 = vunpack.c.h.b16 %v113
    %v264 = vunpack.c.l.b16 %v114
    %v265 = vunpack.c.h.b16 %v114
    %v266 = vunpack.c.l.b16 %v115
    %v267 = vunpack.c.h.b16 %v115
    %v268 = vunpack.c.l.b16 %v116
    %v269 = vunpack.c.h.b16 %v116
    %v270 = vunpack.c.l.b16 %v117
    %v271 = vunpack.c.h.b16 %v117
    %v272 = vunpack.c.l.b16 %v118
    %v273 = vunpack.c.h.b16 %v118
    %v274 = vunpack.c.l.b16 %v119
    %v275 = vunpack.c.h.b16 %v119
    %v276 = vpack.c.b16 %v182, %v180
    %v277 = vpack.c.b16 %v183, %v181
    %v278 = vpack.c.b16 %v186, %v184
    %v279 = vpack.c.b16 %v187, %v185
    %v280 = vpack.c.b16 %v190, %v188
    %v281 = vpack.c.b16 %v191, %v189
    %v282 = vpack.c.b16 %v194, %v192
    %v283 = vpack.c.b16 %v195, %v193
    %v284 = vpack.c.b16 %v198, %v196
    %v285 = vpack.c.b16 %v199, %v197
    %v286 = vpack.c.b16 %v202, %v200
    %v287 = vpack.c.b16 %v203, %v201
    %v288 = vpack.c.b16 %v206, %v204
    %v289 = vpack.c.b16 %v207, %v205
    %v290 = vpack.c.b16 %v210, %v208
    %v291 = vpack.c.b16 %v211, %v209
    %v292 = vpack.c.b16 %v214, %v212
    %v293 = vpack.c.b16 %v215, %v213
    %v294 = vpack.c.b16 %v218, %v216
    %v295 = vpack.c.b16 %v219, %v217
    %v296 = vpack.c.b16 %v222, %v220
    %v297 = vpack.c.b16 %v223, %v221
    %v298 = vpack.c.b16 %v226, %v224
    %v299 = vpack.c.b16 %v227, %v225
    %v300 = vpack.c.b16 %v230, %v228
    %v301 = vpack.c.b16 %v231, %v229
    %v302 = vpack.c.b16 %v234, %v232
    %v303 = vpack.c.b16 %v235, %v233
    %v304 = vpack.c.b16 %v238, %v236
    %v305 = vpack.c.b16 %v239, %v237
    %v306 = vpack.c.b16 %v242, %v240
    %v307 = vpack.c.b16 %v243, %v241
    %v308 = vpack.c.b16 %v246, %v244
    %v309 = vpack.c.b16 %v247, %v245
    %v310 = vpack.c.b16 %v250, %v248
    %v311 = vpack.c.b16 %v251, %v249
    %v312 = vpack.c.b16 %v254, %v252
    %v313 = vpack.c.b16 %v255, %v253
    %v314 = vpack.c.b16 %v258, %v256
    %v315 = vpack.c.b16 %v259, %v257
    %v316 = vpack.c.b16 %v262, %v260
    %v317 = vpack.c.b16 %v263, %v261
    %v318 = vpack.c.b16 %v266, %v264
    %v319 = vpack.c.b16 %v267, %v265
    %v320 = vpack.c.b16 %v270, %v268
    %v321 = vpack.c.b16 %v271, %v269
    %v322 = vpack.c.b16 %v274, %v272
    %v323 = vpack.c.b16 %v275, %v273
    %372 = vmatprep.subr.bf16.mxu0 %v277
    %373 = vmatpush1.bf16.msra.mxu0 %v276
    %374 = vmatprep.subr.bf16.mxu0 %v279
    %375 = vmatpush1.bf16.msra.mxu0 %v278
    %376 = vmatprep.subr.bf16.mxu0 %v281
    %377 = vmatpush1.bf16.msra.mxu0 %v280
    %378 = vmatprep.subr.bf16.mxu0 %v283
    %379 = vmatpush1.bf16.msra.mxu0 %v282
    %380 = vmatprep.subr.bf16.mxu0 %v285
    %381 = vmatpush1.bf16.msra.mxu0 %v284
    %382 = vmatprep.subr.bf16.mxu0 %v287
    %383 = vmatpush1.bf16.msra.mxu0 %v286
    %384 = vmatprep.subr.bf16.mxu0 %v289
    %385 = vmatpush1.bf16.msra.mxu0 %v288
    %386 = vmatprep.subr.bf16.mxu0 %v291
    %387 = vmatpush1.bf16.msra.mxu0 %v290
    %388 = vmatprep.subr.bf16.mxu0 %v293
    %389 = vmatpush1.bf16.msra.mxu0 %v292
    %390 = vmatprep.subr.bf16.mxu0 %v295
    %391 = vmatpush1.bf16.msra.mxu0 %v294
    %392 = vmatprep.subr.bf16.mxu0 %v297
    %393 = vmatpush1.bf16.msra.mxu0 %v296
    %394 = vmatprep.subr.bf16.mxu0 %v299
    %395 = vmatpush1.bf16.msra.mxu0 %v298
    %396 = vmatprep.subr.bf16.mxu0 %v301
    %397 = vmatpush1.bf16.msra.mxu0 %v300
    %398 = vmatprep.subr.bf16.mxu0 %v303
    %399 = vmatpush1.bf16.msra.mxu0 %v302
    %400 = vmatprep.subr.bf16.mxu0 %v305
    %401 = vmatpush1.bf16.msra.mxu0 %v304
    %402 = vmatprep.subr.bf16.mxu0 %v307
    %403 = vmatpush1.bf16.msra.mxu0 %v306
    %404 = vmatprep.mubr.bf16.mxu0 %v70
    %405 = vmatmul.mubr.bf16.gmra.mrb[0].mxu0 %v69
    %v406 = vpop.f32.mrb[0].mxu0
    %v407 = vadd.f32 %v125, %v406
    %v408 = vpop.f32.mrb[0].mxu0
    %v409 = vadd.f32 %v129, %v408
    %v410 = vpop.f32.mrb[0].mxu0
    %v411 = vadd.f32 %v125, %v410
    %v412 = vpop.f32.mrb[0].mxu0
    %v413 = vadd.f32 %v129, %v412
    %414 = vdwg.mxu0
    %415 = vmatprep.subr.bf16.mxu0 %v309
    %416 = vmatpush1.bf16.msra.mxu0 %v308
    %417 = vmatprep.subr.bf16.mxu0 %v311
    %418 = vmatpush1.bf16.msra.mxu0 %v310
    %419 = vmatprep.subr.bf16.mxu0 %v313
    %420 = vmatpush1.bf16.msra.mxu0 %v312
    %421 = vmatprep.subr.bf16.mxu0 %v315
    %422 = vmatpush1.bf16.msra.mxu0 %v314
    %423 = vmatprep.subr.bf16.mxu0 %v317
    %424 = vmatpush1.bf16.msra.mxu0 %v316
    %425 = vmatprep.subr.bf16.mxu0 %v319
    %426 = vmatpush1.bf16.msra.mxu0 %v318
    %427 = vmatprep.subr.bf16.mxu0 %v321
    %428 = vmatpush1.bf16.msra.mxu0 %v320
    %429 = vmatprep.subr.bf16.mxu0 %v323
    %430 = vmatpush1.bf16.msra.mxu0 %v322
    %431 = vmatprep.subr.bf16.mxu0 0
    %432 = vmatpush1.bf16.msra.mxu0 0
    %433 = vmatprep.subr.bf16.mxu0 0
    %434 = vmatpush1.bf16.msra.mxu0 0
    %435 = vmatprep.subr.bf16.mxu0 0
    %436 = vmatpush1.bf16.msra.mxu0 0
    %437 = vmatprep.subr.bf16.mxu0 0
    %438 = vmatpush1.bf16.msra.mxu0 0
    %439 = vmatprep.subr.bf16.mxu0 0
    %440 = vmatpush1.bf16.msra.mxu0 0
    %441 = vmatprep.subr.bf16.mxu0 0
    %442 = vmatpush1.bf16.msra.mxu0 0
    %443 = vmatprep.subr.bf16.mxu0 0
    %444 = vmatpush1.bf16.msra.mxu0 0
    %445 = vmatprep.subr.bf16.mxu0 0
    %446 = vmatpush1.bf16.msra.mxu0 0
    %447 = vmatprep.mubr.bf16.mxu0 0
    %448 = vmatmul.mubr.bf16.gmra.mrb[0].mxu0 %v71
    %v449 = vpop.f32.mrb[0].mxu0
    %v450 = vadd.f32 %v407, %v449
    %v451 = vpop.f32.mrb[0].mxu0
    %v452 = vadd.f32 %v409, %v451
    %v453 = vpop.f32.mrb[0].mxu0
    %v454 = vadd.f32 %v411, %v453
    %v455 = vpop.f32.mrb[0].mxu0
    %v456 = vadd.f32 %v413, %v455
    %457 = vdwg.mxu0
    %v458 = vmax.f32 %v450, 0.0
    %v459 = vmax.f32 %v452, 0.0
    %v460 = vmax.f32 %v454, 0.0
    %v461 = vmax.f32 %v456, 0.0
    %v462 = vpack.c.bf16 %v460, %v458
    %v463 = vpack.c.bf16 %v461, %v459
    %v464 = vld [vmem:[#allocation7] sm:$0xff]
    %v465 = vld [vmem:[#allocation7 + $0x8] sm:$0xff]
    %v466 = vld [vmem:[#allocation7 + $0x10] sm:$0xff]
    %v467 = vld [vmem:[#allocation7 + $0x18] sm:$0xff]
    %v468 = vld [vmem:[#allocation7 + $0x20] sm:$0xff]
    %v469 = vld [vmem:[#allocation7 + $0x28] sm:$0xff]
    %v470 = vld [vmem:[#allocation7 + $0x30] sm:$0xff]
    %v471 = vld [vmem:[#allocation7 + $0x38] sm:$0xff]
    %v472 = vld [vmem:[#allocation7 + $0x40] sm:$0xff]
    %v473 = vld [vmem:[#allocation7 + $0x48] sm:$0xff]
    %v474 = vld [vmem:[#allocation7 + $0x50] sm:$0xff]
    %v475 = vld [vmem:[#allocation7 + $0x58] sm:$0xff]
    %v476 = vld [vmem:[#allocation7 + $0x60] sm:$0xff]
    %v477 = vld [vmem:[#allocation7 + $0x68] sm:$0xff]
    %v478 = vld [vmem:[#allocation7 + $0x70] sm:$0xff]
    %v479 = vld [vmem:[#allocation7 + $0x78] sm:$0xff]
    %v480 = vld [vmem:[#allocation7 + $0x80] sm:$0xff]
    %v481 = vld [vmem:[#allocation7 + $0x88] sm:$0xff]
    %v482 = vld [vmem:[#allocation7 + $0x90] sm:$0xff]
    %v483 = vld [vmem:[#allocation7 + $0x98] sm:$0xff]
    %v484 = vld [vmem:[#allocation7 + $0xa0] sm:$0xff]
    %v485 = vld [vmem:[#allocation7 + $0xa8] sm:$0xff]
    %v486 = vld [vmem:[#allocation7 + $0xb0] sm:$0xff]
    %v487 = vld [vmem:[#allocation7 + $0xb8] sm:$0xff]
    %v488 = vld [vmem:[#allocation7 + $0xc0] sm:$0xff]
    %v489 = vld [vmem:[#allocation7 + $0xc8] sm:$0xff]
    %v490 = vld [vmem:[#allocation7 + $0xd0] sm:$0xff]
    %v491 = vld [vmem:[#allocation7 + $0xd8] sm:$0xff]
    %v492 = vld [vmem:[#allocation7 + $0xe0] sm:$0xff]
    %v493 = vld [vmem:[#allocation7 + $0xe8] sm:$0xff]
    %v494 = vld [vmem:[#allocation7 + $0xf0] sm:$0xff]
    %v495 = vld [vmem:[#allocation7 + $0xf8] sm:$0xff]
    %v496 = vld [vmem:[%s4] sm:$0x3]
    %v498 = vlaneseq
    %v499 = vshrl.u32 %v498, 7
    %v500 = vsub.s32 0, %v499
    %v501 = vrot.slane %v496, %v500
    %v502 = vlaneseq
    %v503 = vshrl.u32 %v502, 7
    %v504 = vsub.s32 1, %v503
    %v505 = vrot.slane %v496, %v504
    %v540 = vunpack.c.l.b16 %v464
    %v541 = vunpack.c.h.b16 %v464
    %v542 = vunpack.c.l.b16 %v465
    %v543 = vunpack.c.h.b16 %v465
    %v544 = vunpack.c.l.b16 %v466
    %v545 = vunpack.c.h.b16 %v466
    %v546 = vunpack.c.l.b16 %v467
    %v547 = vunpack.c.h.b16 %v467
    %v548 = vunpack.c.l.b16 %v468
    %v549 = vunpack.c.h.b16 %v468
    %v550 = vunpack.c.l.b16 %v469
    %v551 = vunpack.c.h.b16 %v469
    %v552 = vunpack.c.l.b16 %v470
    %v553 = vunpack.c.h.b16 %v470
    %v554 = vunpack.c.l.b16 %v471
    %v555 = vunpack.c.h.b16 %v471
    %v556 = vunpack.c.l.b16 %v472
    %v557 = vunpack.c.h.b16 %v472
    %v558 = vunpack.c.l.b16 %v473
    %v559 = vunpack.c.h.b16 %v473
    %v560 = vunpack.c.l.b16 %v474
    %v561 = vunpack.c.h.b16 %v474
    %v562 = vunpack.c.l.b16 %v475
    %v563 = vunpack.c.h.b16 %v475
    %v564 = vunpack.c.l.b16 %v476
    %v565 = vunpack.c.h.b16 %v476
    %v566 = vunpack.c.l.b16 %v477
    %v567 = vunpack.c.h.b16 %v477
    %v568 = vunpack.c.l.b16 %v478
    %v569 = vunpack.c.h.b16 %v478
    %v570 = vunpack.c.l.b16 %v479
    %v571 = vunpack.c.h.b16 %v479
    %v572 = vunpack.c.l.b16 %v480
    %v573 = vunpack.c.h.b16 %v480
    %v574 = vunpack.c.l.b16 %v481
    %v575 = vunpack.c.h.b16 %v481
    %v576 = vunpack.c.l.b16 %v482
    %v577 = vunpack.c.h.b16 %v482
    %v578 = vunpack.c.l.b16 %v483
    %v579 = vunpack.c.h.b16 %v483
    %v580 = vunpack.c.l.b16 %v484
    %v581 = vunpack.c.h.b16 %v484
    %v582 = vunpack.c.l.b16 %v485
    %v583 = vunpack.c.h.b16 %v485
    %v584 = vunpack.c.l.b16 %v486
    %v585 = vunpack.c.h.b16 %v486
    %v586 = vunpack.c.l.b16 %v487
    %v587 = vunpack.c.h.b16 %v487
    %v588 = vunpack.c.l.b16 %v488
    %v589 = vunpack.c.h.b16 %v488
    %v590 = vunpack.c.l.b16 %v489
    %v591 = vunpack.c.h.b16 %v489
    %v592 = vunpack.c.l.b16 %v490
    %v593 = vunpack.c.h.b16 %v490
    %v594 = vunpack.c.l.b16 %v491
    %v595 = vunpack.c.h.b16 %v491
    %v596 = vunpack.c.l.b16 %v492
    %v597 = vunpack.c.h.b16 %v492
    %v598 = vunpack.c.l.b16 %v493
    %v599 = vunpack.c.h.b16 %v493
    %v600 = vunpack.c.l.b16 %v494
    %v601 = vunpack.c.h.b16 %v494
    %v602 = vunpack.c.l.b16 %v495
    %v603 = vunpack.c.h.b16 %v495
    %v604 = vpack.c.b16 %v542, %v540
    %v605 = vpack.c.b16 %v543, %v541
    %v606 = vpack.c.b16 %v546, %v544
    %v607 = vpack.c.b16 %v547, %v545
    %v608 = vpack.c.b16 %v550, %v548
    %v609 = vpack.c.b16 %v551, %v549
    %v610 = vpack.c.b16 %v554, %v552
    %v611 = vpack.c.b16 %v555, %v553
    %v612 = vpack.c.b16 %v558, %v556
    %v613 = vpack.c.b16 %v559, %v557
    %v614 = vpack.c.b16 %v562, %v560
    %v615 = vpack.c.b16 %v563, %v561
    %v616 = vpack.c.b16 %v566, %v564
    %v617 = vpack.c.b16 %v567, %v565
    %v618 = vpack.c.b16 %v570, %v568
    %v619 = vpack.c.b16 %v571, %v569
    %v620 = vpack.c.b16 %v574, %v572
    %v621 = vpack.c.b16 %v575, %v573
    %v622 = vpack.c.b16 %v578, %v576
    %v623 = vpack.c.b16 %v579, %v577
    %v624 = vpack.c.b16 %v582, %v580
    %v625 = vpack.c.b16 %v583, %v581
    %v626 = vpack.c.b16 %v586, %v584
    %v627 = vpack.c.b16 %v587, %v585
    %v628 = vpack.c.b16 %v590, %v588
    %v629 = vpack.c.b16 %v591, %v589
    %v630 = vpack.c.b16 %v594, %v592
    %v631 = vpack.c.b16 %v595, %v593
    %v632 = vpack.c.b16 %v598, %v596
    %v633 = vpack.c.b16 %v599, %v597
    %v634 = vpack.c.b16 %v602, %v600
    %v635 = vpack.c.b16 %v603, %v601
    %668 = vmatprep.subr.bf16.mxu0 %v605
    %669 = vmatpush1.bf16.msra.mxu0 %v604
    %670 = vmatprep.subr.bf16.mxu0 %v607
    %671 = vmatpush1.bf16.msra.mxu0 %v606
    %672 = vmatprep.subr.bf16.mxu0 %v609
    %673 = vmatpush1.bf16.msra.mxu0 %v608
    %674 = vmatprep.subr.bf16.mxu0 %v611
    %675 = vmatpush1.bf16.msra.mxu0 %v610
    %676 = vmatprep.subr.bf16.mxu0 %v613
    %677 = vmatpush1.bf16.msra.mxu0 %v612
    %678 = vmatprep.subr.bf16.mxu0 %v615
    %679 = vmatpush1.bf16.msra.mxu0 %v614
    %680 = vmatprep.subr.bf16.mxu0 %v617
    %681 = vmatpush1.bf16.msra.mxu0 %v616
    %682 = vmatprep.subr.bf16.mxu0 %v619
    %683 = vmatpush1.bf16.msra.mxu0 %v618
    %684 = vmatprep.subr.bf16.mxu0 %v621
    %685 = vmatpush1.bf16.msra.mxu0 %v620
    %686 = vmatprep.subr.bf16.mxu0 %v623
    %687 = vmatpush1.bf16.msra.mxu0 %v622
    %688 = vmatprep.subr.bf16.mxu0 %v625
    %689 = vmatpush1.bf16.msra.mxu0 %v624
    %690 = vmatprep.subr.bf16.mxu0 %v627
    %691 = vmatpush1.bf16.msra.mxu0 %v626
    %692 = vmatprep.subr.bf16.mxu0 %v629
    %693 = vmatpush1.bf16.msra.mxu0 %v628
    %694 = vmatprep.subr.bf16.mxu0 %v631
    %695 = vmatpush1.bf16.msra.mxu0 %v630
    %696 = vmatprep.subr.bf16.mxu0 %v633
    %697 = vmatpush1.bf16.msra.mxu0 %v632
    %698 = vmatprep.subr.bf16.mxu0 %v635
    %699 = vmatpush1.bf16.msra.mxu0 %v634
    %700 = vmatprep.mubr.bf16.mxu0 %v463
    %701 = vmatmul.mubr.bf16.gmra.mrb[0].mxu0 %v462
    %v702 = vpop.f32.mrb[0].mxu0
    %v703 = vadd.f32 %v501, %v702
    %v704 = vpop.f32.mrb[0].mxu0
    %v705 = vadd.f32 %v505, %v704
    %v706 = vpop.f32.mrb[0].mxu0
    %v707 = vadd.f32 %v501, %v706
    %v708 = vpop.f32.mrb[0].mxu0
    %v709 = vadd.f32 %v505, %v708
    %710 = vdwg.mxu0
    %711 = vst [vmem:[#allocation8] sm:$0xff] %v703
    %712 = vst [vmem:[#allocation8 + $0x8] sm:$0xff] %v705
    %713 = vst [vmem:[#allocation8 + $0x10] sm:$0xff] %v707
    %714 = vst [vmem:[#allocation8 + $0x18] sm:$0xff] %v709
    // Predicated region
    $region34: #{tpu_custom_call.1} parent=1 // pred_check
      _
    $region35: #{tpu_custom_call.1} parent=1 // pred_check_branch
      %716 = sbr.rel (0) target = $region37
    $region36: #{tpu_custom_call.1} parent=1 // pred_region
      %s718 = ssub.s32 512, 512
      %719 = vsyncadd [#allocation4], %s718
      %s720 = sshll.u32 [#allocation8], 4
      %s721 = int_to_ptr.vmem [resolvable:$true] %s720
      %726 = dma.vmem_to_hbm [thread:$0]  %s721, 512, %s5, [#allocation4], 256, 256, 16
    $region37: #{tpu_custom_call.1} parent=1 // pred_fallthru
      _
    // Predicated region
    $region38: #{tpu_custom_call.1} parent=1 // pred_check
      _
    $region39: #{tpu_custom_call.1} parent=1 // pred_check_branch
      %728 = sbr.rel (0) target = $region41
    $region40: #{tpu_custom_call.1} parent=1 // pred_region
      %729 = dma.done [#allocation4], 512
    $region41: #{tpu_custom_call.1} parent=1 // pred_fallthru
      _
    %730 = vsyncpa [#allocation3], 1
    %731 = vsyncpa [#allocation6], 1
    %732 = vsyncpa [#allocation4], 1

</llo_original>
